<compile_context>
chip_gen: v7x
topology: tpu7x:2x2x1
jax: 0.10.0
libtpu: 0.0.40
codegen_flags: <defaults>
</compile_context>

<pallas_src>
import jax
import jax.numpy as jnp
from jax.experimental import pallas as pl
from jax.experimental.pallas import tpu as pltpu


_LANE = 128
_SUBLANE = 8
_TM_MAX = 4096


def _round_up(x, m):
    return (x + m - 1) // m * m


def _round_down(x, m):
    return (x // m) * m


def _tpu_vmem_bytes():
    """Physical VMEM per TensorCore; conservative fallback if query fails."""
    try:
        return int(pltpu.get_tpu_info().vmem_capacity_bytes)
    except Exception:  # pragma: no cover - e.g. older runtimes
        return 64 << 20


def _gate_kernel(x_ref, wg_ref, o_ref):
    # One token-tile x expert-tile matmul on the MXU, f32 accumulation.
    o_ref[...] = jnp.dot(
        x_ref[...], wg_ref[...], preferred_element_type=jnp.float32
    ).astype(o_ref.dtype)


def _choose_tiles(tokens, model_dim, n_pad, x_bytes, w_bytes, out_bytes,
                  tile_budget, prefer_even_grid):
    """Pick (tm, tn) so double-buffered tiles fit the VMEM tile budget."""
    # 1) Expert-dim tile: keep the wg tile below ~1/3 of the budget.
    tn = n_pad
    if model_dim * tn * w_bytes > tile_budget // 3:
        tn = _round_down((tile_budget // 3) // (model_dim * w_bytes), _LANE)
        if tn >= 256:
            tn = _round_down(tn, 256)      # fill the 256-wide MXU on v6e/v7x
        tn = max(tn, _LANE)
    n_tiles_n = pl.cdiv(n_pad, tn)

    # 2) Token tile from the remaining budget.  The wg block is counted once
    #    when its block index is invariant (constant index_map => single DMA).
    wg_bufs = 1 if n_tiles_n == 1 else 2
    wg_cost = wg_bufs * model_dim * tn * w_bytes
    per_row = 2 * model_dim * x_bytes + 2 * tn * out_bytes
    tm = (tile_budget - wg_cost) // max(per_row, 1)
    tm = min(tm, _TM_MAX, _round_up(tokens, _SUBLANE))
    tm = max(_SUBLANE, _round_down(tm, _SUBLANE))   # only sublane alignment needed

    # 3) On small-VMEM (v7x-like) parts prefer an even token-tile count so the
    #    "parallel" token axis splits evenly across the two TensorCores.
    n_tiles_m = pl.cdiv(tokens, tm)
    if prefer_even_grid and n_tiles_m > 1 and n_tiles_m % 2 == 1:
        tm_even = _round_up(pl.cdiv(tokens, n_tiles_m + 1), _SUBLANE)
        if tm_even >= _SUBLANE and pl.cdiv(tokens, tm_even) % 2 == 0:
            tm = tm_even

    return int(tm), int(tn)


def custom_gate(x, wg):
    """y = x @ wg  (gating logits), matching torch.matmul(x, self.wg)."""
    orig_shape = x.shape
    model_dim, num_experts = wg.shape
    assert orig_shape[-1] == model_dim

    # Flatten leading dims -> [tokens, model_dim] (pure glue, no compute).
    x2d = x.reshape(-1, model_dim)
    tokens = x2d.shape[0]

    out_dtype = x.dtype                      # match torch.matmul output dtype
    wg_c = wg.astype(x.dtype)                # cast weights to activation dtype

    # Lane-dense output stores: pad expert dim up to a multiple of 128.
    n_pad = _round_up(max(num_experts, 1), _LANE)
    if n_pad != num_experts:
        wg_c = jnp.pad(wg_c, ((0, 0), (0, n_pad - num_experts)))

    x_bytes = jnp.dtype(x2d.dtype).itemsize
    w_bytes = jnp.dtype(wg_c.dtype).itemsize
    out_bytes = jnp.dtype(out_dtype).itemsize

    # Generation-aware VMEM budgeting.
    vmem = _tpu_vmem_bytes()
    vmem_limit = (vmem * 3) // 4             # 96 MiB on 128 MiB parts, 48 MiB on v7x
    tile_budget = (vmem * 9) // 16           # 72 MiB on v5e/v6e, 36 MiB on v7x
    prefer_even_grid = vmem <= (96 << 20)    # proxy for 2-TensorCore (v7x) parts

    tm, tn = _choose_tiles(tokens, model_dim, n_pad, x_bytes, w_bytes,
                           out_bytes, tile_budget, prefer_even_grid)

    grid = (pl.cdiv(tokens, tm), pl.cdiv(n_pad, tn))

    cost = pl.CostEstimate(
        flops=2 * tokens * model_dim * n_pad,
        transcendentals=0,
        bytes_accessed=(grid[1] * tokens * model_dim * x_bytes
                        + model_dim * n_pad * w_bytes
                        + tokens * n_pad * out_bytes),
    )

    out = pl.pallas_call(
        _gate_kernel,
        out_shape=jax.ShapeDtypeStruct((tokens, n_pad), out_dtype),
        grid_spec=pltpu.PrefetchScalarGridSpec(
            num_scalar_prefetch=0,
            grid=grid,
            in_specs=[
                pl.BlockSpec((tm, model_dim), lambda i, j: (i, 0)),
                pl.BlockSpec((model_dim, tn), lambda i, j: (0, j)),
            ],
            out_specs=pl.BlockSpec((tm, tn), lambda i, j: (i, j)),
        ),
        compiler_params=pltpu.CompilerParams(
            dimension_semantics=("parallel", "parallel"),
            vmem_limit_bytes=int(vmem_limit),
        ),
        cost_estimate=cost,
    )(x2d, wg_c)

    # Drop expert-dim padding (narrow slice) and restore the leading dims.
    if n_pad != num_experts:
        out = out[:, :num_experts]
    return out.reshape(orig_shape[:-1] + (num_experts,))


if __name__ == "__main__":
    # Small shapes consistent with the Tutel gate: tokens = batch * seq.
    model_dim = 32
    num_global_experts = 8
    batch, seq = 2, 8

    key = jax.random.PRNGKey(0)
    k_x, k_w = jax.random.split(key)

    # Deterministic parameter init (stand-in for torch.manual_seed(1) randn * 0.001).
    wg = jax.random.normal(k_w, (model_dim, num_global_experts), jnp.float32) * 0.001
    x = jax.random.normal(k_x, (batch, seq, model_dim), jnp.float32)

    y = custom_gate(x, wg)
    jax.block_until_ready(y)

    # Correctness check against plain JAX reference.
    y_ref = jnp.matmul(x, wg)
    assert y.shape == (batch, seq, num_global_experts)
    assert jnp.allclose(y, y_ref, atol=1e-5, rtol=1e-5)

    print("KERNEL_OK")
</pallas_src>

<mosaic_0001>
module attributes {stable_mosaic.version = 11 : i64} {
  func.func @_gate_kernel(%arg0: i32, %arg1: i32, %arg2: memref<16x32xf32, #tpu.memory_space<vmem>>, %arg3: memref<32x128xf32, #tpu.memory_space<vmem>>, %arg4: memref<16x128xf32, #tpu.memory_space<vmem>>) attributes {dimension_semantics = [#tpu.dimension_semantics<parallel>, #tpu.dimension_semantics<parallel>], iteration_bounds = array<i64: 1, 1>, scalar_prefetch = 0 : i64, scratch_operands = 0 : i64, tpu.core_type = #tpu.core_type<tc>, window_params = [{transform_indices = @transform_0, window_bounds = array<i64: 16, 32>}, {transform_indices = @transform_1, window_bounds = array<i64: 32, 128>}, {transform_indices = @transform_2, window_bounds = array<i64: 16, 128>}]} {
    %c0 = arith.constant 0 : index
    %c0_0 = arith.constant 0 : index
    %0 = vector.load %arg2[%c0, %c0_0] : memref<16x32xf32, #tpu.memory_space<vmem>>, vector<16x32xf32>
    %c0_1 = arith.constant 0 : index
    %c0_2 = arith.constant 0 : index
    %1 = vector.load %arg3[%c0_1, %c0_2] : memref<32x128xf32, #tpu.memory_space<vmem>>, vector<32x128xf32>
    %cst = arith.constant dense<0.000000e+00> : vector<16x128xf32>
    %2 = tpu.matmul %0, %1, %cst {dimension_numbers = #tpu.dot_dimension_numbers<[1], [0], [0], [1], [0, 0, 1, 1], [], []>} : vector<16x32xf32>, vector<32x128xf32>, vector<16x128xf32> -> vector<16x128xf32>
    %c0_3 = arith.constant 0 : index
    %c0_4 = arith.constant 0 : index
    %3 = vector.load %arg4[%c0_3, %c0_4] : memref<16x128xf32, #tpu.memory_space<vmem>>, vector<16x128xf32>
    tpu.vector_store %arg4[%c0_3, %c0_4], %2 {strides = array<i32>} : memref<16x128xf32, #tpu.memory_space<vmem>>, vector<16x128xf32>,
    return
  }
  func.func @transform_0(%arg0: i32, %arg1: i32) -> (i32, i32) {
    %c0_i32 = arith.constant 0 : i32
    %c0_i32_0 = arith.constant 0 : i32
    return %arg0, %c0_i32 : i32, i32
  }
  func.func @transform_1(%arg0: i32, %arg1: i32) -> (i32, i32) {
    %c0_i32 = arith.constant 0 : i32
    %c0_i32_0 = arith.constant 0 : i32
    return %c0_i32, %arg1 : i32, i32
  }
  func.func @transform_2(%arg0: i32, %arg1: i32) -> (i32, i32) {
    %c0_i32 = arith.constant 0 : i32
    return %arg0, %arg1 : i32, i32
  }
}

</mosaic_0001>

<llo_original>
// kernel: tpu_custom_call.1
$region0: #{tpu_custom_call.1}
  #allocation0 [shape = 'u32[]', space=smem, size = 0x4, offset = 0x4, fixed_abs, tag = 'smem constant byte address 0x4 - core index']
  #allocation1 [shape = 'u32[144,128]{1,0:T(1,128)}', space=vmem, size = 0x12000, scoped, tag = 'internal scratch']
  %s0 = inlined_call_operand.hbm [shape: f32[16,32], index: 0, kind: input, shape index: {}]
  %s1 = inlined_call_operand.hbm [shape: f32[32,128], index: 1, kind: input, shape index: {}]
  %s2 = inlined_call_operand.hbm [shape: f32[16,128], index: 2, kind: output, shape index: {}]
  %s3 = sld [smem:[#allocation0]]
  $region26: #{tpu_custom_call.1} parent=0
    _
  %s5 = ssub.s32 1, %s3
  %s6 = scalar_select 0, %s5, %s3
  $region1: #{tpu_custom_call.1} parent=0
    #allocation2 [shape = 'u8[8192]{0}', space=vmem, size = 0x2000, scoped, tag = 'input window, operand 0, single buffered']
    #allocation3 [shape = 's32[1]{0}', space=sflag, size = 0x4, scoped, tag = 'scoped memory for tpu_custom_call.1']
    #allocation4 [shape = 's32[1]{0}', space=sflag, size = 0x4, scoped, tag = 'scoped memory for tpu_custom_call.1']
    #allocation5 [shape = 'u8[16384]{0}', space=vmem, size = 0x4000, scoped, tag = 'input window, operand 1, single buffered']
    #allocation6 [shape = 's32[1]{0}', space=sflag, size = 0x4, scoped, tag = 'scoped memory for tpu_custom_call.1']
    #allocation7 [shape = 'u8[8192]{0}', space=vmem, size = 0x2000, scoped, tag = 'output window, operand 0, single buffered']
    %7 = vsyncpa [#allocation3], 0
    %8 = vsyncpa [#allocation6], 0
    %9 = vsyncpa [#allocation4], 0
    // Predicated region
    $region2: #{tpu_custom_call.1} parent=1 // pred_check
      _
    $region3: #{tpu_custom_call.1} parent=1 // pred_check_branch
      %11 = sbr.rel (0) target = $region5
    $region4: #{tpu_custom_call.1} parent=1 // pred_region
      %s13 = ssub.s32 256, 256
      %14 = vsyncadd [#allocation3], %s13
      %s15 = sshll.u32 [#allocation2], 4
      %s16 = int_to_ptr.vmem [resolvable:$true] %s15
      %21 = dma.hbm_to_vmem [thread:$0]  %s0, 256, %s16, [#allocation3], 128, 128, 8
    $region5: #{tpu_custom_call.1} parent=1 // pred_fallthru
      _
    // Predicated region
    $region6: #{tpu_custom_call.1} parent=1 // pred_check
      _
    $region7: #{tpu_custom_call.1} parent=1 // pred_check_branch
      %23 = sbr.rel (0) target = $region9
    $region8: #{tpu_custom_call.1} parent=1 // pred_region
      %s25 = ssub.s32 512, 512
      %26 = vsyncadd [#allocation6], %s25
      %s27 = sshll.u32 [#allocation5], 4
      %s28 = int_to_ptr.vmem [resolvable:$true] %s27
      %33 = dma.hbm_to_vmem [thread:$0]  %s1, 512, %s28, [#allocation6], 128, 128, 8
    $region9: #{tpu_custom_call.1} parent=1 // pred_fallthru
      _
    // Predicated region
    $region10: #{tpu_custom_call.1} parent=1 // pred_check
      _
    $region11: #{tpu_custom_call.1} parent=1 // pred_check_branch
      %35 = sbr.rel (0) target = $region13
    $region12: #{tpu_custom_call.1} parent=1 // pred_region
      %36 = dma.done [#allocation3], 256
    $region13: #{tpu_custom_call.1} parent=1 // pred_fallthru
      _
    // Predicated region
    $region14: #{tpu_custom_call.1} parent=1 // pred_check
      _
    $region15: #{tpu_custom_call.1} parent=1 // pred_check_branch
      %38 = sbr.rel (0) target = $region17
    $region16: #{tpu_custom_call.1} parent=1 // pred_region
      %39 = dma.done [#allocation6], 512
    $region17: #{tpu_custom_call.1} parent=1 // pred_fallthru
      _
    %v40 = vld [vmem:[#allocation2] sm:$0xff]
    %v41 = vld [vmem:[#allocation2 + $0x8] sm:$0xff]
    %v42 = vld [vmem:[#allocation5] sm:$0xff]
    %v43 = vld [vmem:[#allocation5 + $0x8] sm:$0xff]
    %v44 = vld [vmem:[#allocation5 + $0x10] sm:$0xff]
    %v45 = vld [vmem:[#allocation5 + $0x18] sm:$0xff]
    %vm46 = vcmask 261120
    %v48 = vsel %vm46, %v40, 0
    %v51 = vsel %vm46, %v41, 0
    %53 = vmatprep.subr.mxu0 0.0
    %54 = vmatpush1.msra.mxu0 %v42
    %55 = vmatprep.subr.mxu0 0.0
    %56 = vmatpush1.msra.mxu0 %v43
    %57 = vmatprep.subr.mxu0 0.0
    %58 = vmatpush1.msra.mxu0 %v44
    %59 = vmatprep.subr.mxu0 0.0
    %60 = vmatpush1.msra.mxu0 %v45
    %61 = vmatprep.subr.mxu0 0.0
    %62 = vmatpush1.msra.mxu0 0.0
    %63 = vmatprep.subr.mxu0 0.0
    %64 = vmatpush1.msra.mxu0 0.0
    %65 = vmatprep.subr.mxu0 0.0
    %66 = vmatpush1.msra.mxu0 0.0
    %67 = vmatprep.subr.mxu0 0.0
    %68 = vmatpush1.msra.mxu0 0.0
    %69 = vmatprep.subr.mxu0 0.0
    %70 = vmatpush1.msra.mxu0 0.0
    %71 = vmatprep.subr.mxu0 0.0
    %72 = vmatpush1.msra.mxu0 0.0
    %73 = vmatprep.subr.mxu0 0.0
    %74 = vmatpush1.msra.mxu0 0.0
    %75 = vmatprep.subr.mxu0 0.0
    %76 = vmatpush1.msra.mxu0 0.0
    %77 = vmatprep.subr.mxu0 0.0
    %78 = vmatpush1.msra.mxu0 0.0
    %79 = vmatprep.subr.mxu0 0.0
    %80 = vmatpush1.msra.mxu0 0.0
    %81 = vmatprep.subr.mxu0 0.0
    %82 = vmatpush1.msra.mxu0 0.0
    %83 = vmatprep.subr.mxu0 0.0
    %84 = vmatpush1.msra.mxu0 0.0
    %85 = vmatprep.subr.mxu0 0.0
    %86 = vmatpush1.msra.mxu0 0.0
    %87 = vmatprep.subr.mxu0 0.0
    %88 = vmatpush1.msra.mxu0 0.0
    %89 = vmatprep.subr.mxu0 0.0
    %90 = vmatpush1.msra.mxu0 0.0
    %91 = vmatprep.subr.mxu0 0.0
    %92 = vmatpush1.msra.mxu0 0.0
    %93 = vmatprep.subr.mxu0 0.0
    %94 = vmatpush1.msra.mxu0 0.0
    %95 = vmatprep.subr.mxu0 0.0
    %96 = vmatpush1.msra.mxu0 0.0
    %97 = vmatprep.subr.mxu0 0.0
    %98 = vmatpush1.msra.mxu0 0.0
    %99 = vmatprep.subr.mxu0 0.0
    %100 = vmatpush1.msra.mxu0 0.0
    %101 = vmatprep.subr.mxu0 0.0
    %102 = vmatpush1.msra.mxu0 0.0
    %103 = vmatprep.subr.mxu0 0.0
    %104 = vmatpush1.msra.mxu0 0.0
    %105 = vmatprep.subr.mxu0 0.0
    %106 = vmatpush1.msra.mxu0 0.0
    %107 = vmatprep.subr.mxu0 0.0
    %108 = vmatpush1.msra.mxu0 0.0
    %109 = vmatprep.subr.mxu0 0.0
    %110 = vmatpush1.msra.mxu0 0.0
    %111 = vmatprep.subr.mxu0 0.0
    %112 = vmatpush1.msra.mxu0 0.0
    %113 = vmatprep.subr.mxu0 0.0
    %114 = vmatpush1.msra.mxu0 0.0
    %115 = vmatprep.subr.mxu0 0.0
    %116 = vmatpush1.msra.mxu0 0.0
    %117 = vmatprep.mubr.f32.mxu0 0.0
    %118 = vmatmul.mubr.f32.gmra.mrb[0].mxu0 %v48
    %v119 = vpop.f32.mrb[0].mxu0
    %v120 = vadd.f32 0.0, %v119
    %v121 = vpop.f32.mrb[0].mxu0
    %122 = vmatprep.mubr.f32.mxu0 0.0
    %123 = vmatmul.mubr.f32.gmra.mrb[0].mxu0 %v51
    %v124 = vpop.f32.mrb[0].mxu0
    %v125 = vadd.f32 0.0, %v124
    %v126 = vpop.f32.mrb[0].mxu0
    %127 = vdwg.mxu0
    %128 = vst [vmem:[#allocation7] sm:$0xff] %v120
    %129 = vst [vmem:[#allocation7 + $0x8] sm:$0xff] %v125
    // Predicated region
    $region18: #{tpu_custom_call.1} parent=1 // pred_check
      _
    $region19: #{tpu_custom_call.1} parent=1 // pred_check_branch
      %131 = sbr.rel (0) target = $region21
    $region20: #{tpu_custom_call.1} parent=1 // pred_region
      %s133 = ssub.s32 256, 256
      %134 = vsyncadd [#allocation4], %s133
      %s135 = sshll.u32 [#allocation7], 4
      %s136 = int_to_ptr.vmem [resolvable:$true] %s135
      %141 = dma.vmem_to_hbm [thread:$0]  %s136, 256, %s2, [#allocation4], 128, 128, 8
    $region21: #{tpu_custom_call.1} parent=1 // pred_fallthru
      _
    // Predicated region
    $region22: #{tpu_custom_call.1} parent=1 // pred_check
      _
    $region23: #{tpu_custom_call.1} parent=1 // pred_check_branch
      %143 = sbr.rel (0) target = $region25
    $region24: #{tpu_custom_call.1} parent=1 // pred_region
      %144 = dma.done [#allocation4], 256
    $region25: #{tpu_custom_call.1} parent=1 // pred_fallthru
      _
    %145 = vsyncpa [#allocation3], 1
    %146 = vsyncpa [#allocation6], 1
    %147 = vsyncpa [#allocation4], 1

</llo_original>
